<compile_context>
chip_gen: v7x
topology: tpu7x:2x2x1
jax: 0.10.0
libtpu: 0.0.40
codegen_flags: <defaults>
</compile_context>

<pallas_src>
import jax
import jax.numpy as jnp
from jax.experimental import pallas as pl
from jax.experimental.pallas import tpu as pltpu


# ---------------------------------------------------------------------------
# Kernel
# ---------------------------------------------------------------------------
def _scale_ensemble_kernel(x_ref, w_ref, o_ref):
    # x_ref: (TB, TKD) tile in x's *native* dtype; w_ref: (1, TKD) already in
    # the output dtype (broadcasts over rows); o_ref: (TB, TKD).
    # The promotion cast runs on the VPU here, hidden under the HBM roofline.
    o_ref[...] = x_ref[...].astype(o_ref.dtype) * w_ref[...]


# ---------------------------------------------------------------------------
# Tiling / compiler-parameter helpers
# ---------------------------------------------------------------------------
def _vmem_limit_bytes() -> int:
    """Scoped-VMEM limit with ~25% headroom under physical capacity."""
    try:
        cap = int(pltpu.get_tpu_info().vmem_capacity_bytes)
    except Exception:  # older jax / tracing off-device
        cap = 128 << 20  # v5e/v6e physical VMEM
    # -> 64 MiB on v5e/v6e (128 MiB physical), ~48 MiB on v7x (64 MiB physical)
    return int(min(64 << 20, (cap * 3) // 4))


def _choose_tiles(rows: int, kd: int, x_itemsize: int, out_itemsize: int,
                  budget_bytes: int, target_out_bytes: int = 8 << 20):
    """Pick (row_tile, kd_tile) for a (rows, kd) elementwise kernel.

    The real pipelined footprint is ~2*(x tile) + 2*(out tile) (+ weight row),
    so the chooser budgets against that, and splits the kd axis in multiples
    of 128 when even a minimal (8-row) tile of the full row would not fit.
    """
    per_elem = 2 * (x_itemsize + out_itemsize)  # double-buffered in + out
    min_tb = rows if rows < 8 else 8

    # kd (lane) tile: keep the full row if the minimal row tile fits the
    # budget; otherwise split kd in multiples of 128 (stores stay lane-dense).
    if kd <= 128 or per_elem * min_tb * kd <= budget_bytes:
        tkd = kd
    else:
        tkd = (budget_bytes // (per_elem * min_tb)) // 128 * 128
        tkd = int(max(128, min(tkd, kd)))

    # Row tile: aim for ~target_out_bytes per output tile, capped by budget.
    max_tb_budget = max(1, budget_bytes // (per_elem * tkd))
    max_tb_target = max(1, target_out_bytes // (out_itemsize * tkd))
    tb = min(rows, max_tb_budget, max_tb_target)
    if tb < rows:
        tb = min(rows, max(min_tb, (tb // 8) * 8))  # (8, 128) block constraint
    return int(tb), int(tkd)


def _dimension_semantics_candidates():
    """Preference-ordered dimension_semantics for the (rows, kd) grid."""
    cands = []
    core_parallel = getattr(pltpu, "CORE_PARALLEL", None)
    arbitrary = getattr(pltpu, "ARBITRARY", None)
    if core_parallel is not None and arbitrary is not None:
        # Shard the row axis across the 2 TensorCores on v7x (no-op on 1-TC chips).
        cands.append((core_parallel, arbitrary))
    cands.append(("parallel", "arbitrary"))
    return cands


# ---------------------------------------------------------------------------
# Wrapper
# ---------------------------------------------------------------------------
def scale_ensemble(x: jax.Array, weight: jax.Array) -> jax.Array:
    """x: (..., K, D), weight: (K, D) -> x * weight (PyTorch broadcast semantics)."""
    K, D = weight.shape
    assert x.ndim >= 2 and x.shape[-2:] == (K, D), (x.shape, weight.shape)

    out_dtype = jnp.result_type(x.dtype, weight.dtype)  # PyTorch type promotion
    lead = x.shape[:-2]
    rows = 1
    for s in lead:
        rows *= int(s)
    kd = K * D

    # Lane-dense 2-D layout: last dim K*D, leading dims fused into rows.
    # x keeps its native dtype (cast happens in-kernel); only the tiny weight
    # row is pre-cast.
    x2 = x.reshape(rows, kd)
    w2 = weight.reshape(1, kd).astype(out_dtype)

    x_item = jnp.dtype(x2.dtype).itemsize
    out_item = jnp.dtype(out_dtype).itemsize
    vmem_limit = _vmem_limit_bytes()
    tb, tkd = _choose_tiles(rows, kd, x_item, out_item,
                            budget_bytes=(vmem_limit * 7) // 10)
    grid = (pl.cdiv(rows, tb), pl.cdiv(kd, tkd))

    cost = pl.CostEstimate(
        flops=rows * kd,
        transcendentals=0,
        bytes_accessed=rows * kd * (x_item + out_item) + kd * out_item,
    )

    def _run(dim_semantics):
        return pl.pallas_call(
            _scale_ensemble_kernel,
            out_shape=jax.ShapeDtypeStruct((rows, kd), out_dtype),
            grid_spec=pltpu.PrefetchScalarGridSpec(
                num_scalar_prefetch=0,
                grid=grid,
                in_specs=[
                    pl.BlockSpec((tb, tkd), lambda i, j: (i, j)),
                    # Weight row: block index constant along the row axis ->
                    # stays VMEM-resident; re-fetched only when the (rare) kd
                    # axis advances.
                    pl.BlockSpec((1, tkd), lambda i, j: (0, j)),
                ],
                out_specs=pl.BlockSpec((tb, tkd), lambda i, j: (i, j)),
            ),
            compiler_params=pltpu.CompilerParams(
                dimension_semantics=dim_semantics,
                vmem_limit_bytes=vmem_limit,
            ),
            cost_estimate=cost,
        )(x2, w2)

    candidates = _dimension_semantics_candidates()
    out2 = None
    for idx, sem in enumerate(candidates):
        try:
            out2 = jax.block_until_ready(_run(sem))
            break
        except Exception:
            if idx == len(candidates) - 1:
                raise  # even the plain-"parallel" path failed: surface it
    return out2.reshape(*lead, K, D)


def init_weight(key, k: int, d: int, init: str) -> jax.Array:
    """Deterministic parameter init mirroring ScaleEnsemble.reset_parameters."""
    if init == "ones":
        return jnp.ones((k, d), dtype=jnp.float32)
    elif init == "normal":
        return jax.random.normal(key, (k, d), dtype=jnp.float32)
    elif init == "random-signs":
        bern = jax.random.bernoulli(key, 0.5, (k, d)).astype(jnp.float32)
        return bern * 2.0 - 1.0  # values in {-1, +1}
    else:
        raise ValueError(f"Unknown weight_init: {init}")


if __name__ == "__main__":
    key = jax.random.PRNGKey(0)
    k_x, k_w = jax.random.split(key)

    B, K, D = 2, 8, 32  # small demo shapes: batch=2, ensemble k=8, hidden d=32
    weight = init_weight(k_w, K, D, init="random-signs")

    # Same-dtype path (f32 * f32).
    x = jax.random.normal(k_x, (B, K, D), dtype=jnp.float32)
    out = jax.block_until_ready(scale_ensemble(x, weight))
    ref = x * weight[None, :, :]
    assert out.shape == ref.shape
    assert out.dtype == ref.dtype
    assert jnp.allclose(out, ref, atol=1e-6, rtol=1e-6)

    # Mixed-dtype path (bf16 x, f32 weight) — exercises the in-kernel promotion.
    x_bf16 = x.astype(jnp.bfloat16)
    out_bf16 = jax.block_until_ready(scale_ensemble(x_bf16, weight))
    ref_bf16 = x_bf16 * weight[None, :, :]
    assert out_bf16.shape == ref_bf16.shape
    assert out_bf16.dtype == ref_bf16.dtype
    assert jnp.allclose(out_bf16, ref_bf16, atol=1e-6, rtol=1e-6)

    print("KERNEL_OK")
</pallas_src>

<mosaic_0001>
module attributes {stable_mosaic.version = 11 : i64} {
  func.func @_scale_ensemble_kernel(%arg0: i32, %arg1: i32, %arg2: memref<2x256xf32, #tpu.memory_space<vmem>>, %arg3: memref<1x256xf32, #tpu.memory_space<vmem>>, %arg4: memref<2x256xf32, #tpu.memory_space<vmem>>) attributes {dimension_semantics = [#tpu.dimension_semantics<core_parallel>, #tpu.dimension_semantics<arbitrary>], iteration_bounds = array<i64: 1, 1>, scalar_prefetch = 0 : i64, scratch_operands = 0 : i64, tpu.core_type = #tpu.core_type<tc>, window_params = [{transform_indices = @transform_0, window_bounds = array<i64: 2, 256>}, {transform_indices = @transform_1, window_bounds = array<i64: 1, 256>}, {transform_indices = @transform_2, window_bounds = array<i64: 2, 256>}]} {
    %c0 = arith.constant 0 : index
    %c0_0 = arith.constant 0 : index
    %0 = vector.load %arg2[%c0, %c0_0] : memref<2x256xf32, #tpu.memory_space<vmem>>, vector<2x256xf32>
    %c0_1 = arith.constant 0 : index
    %c0_2 = arith.constant 0 : index
    %1 = vector.load %arg3[%c0_1, %c0_2] : memref<1x256xf32, #tpu.memory_space<vmem>>, vector<1x256xf32>
    %2 = vector.broadcast %1 : vector<1x256xf32> to vector<2x256xf32>
    %3 = arith.mulf %0, %2 : vector<2x256xf32>
    %c0_3 = arith.constant 0 : index
    %c0_4 = arith.constant 0 : index
    %4 = vector.load %arg4[%c0_3, %c0_4] : memref<2x256xf32, #tpu.memory_space<vmem>>, vector<2x256xf32>
    tpu.vector_store %arg4[%c0_3, %c0_4], %3 {strides = array<i32>} : memref<2x256xf32, #tpu.memory_space<vmem>>, vector<2x256xf32>,
    return
  }
  func.func @transform_0(%arg0: i32, %arg1: i32) -> (i32, i32) {
    %c0_i32 = arith.constant 0 : i32
    return %arg0, %arg1 : i32, i32
  }
  func.func @transform_1(%arg0: i32, %arg1: i32) -> (i32, i32) {
    %c0_i32 = arith.constant 0 : i32
    %c0_i32_0 = arith.constant 0 : i32
    return %c0_i32, %arg1 : i32, i32
  }
  func.func @transform_2(%arg0: i32, %arg1: i32) -> (i32, i32) {
    %c0_i32 = arith.constant 0 : i32
    return %arg0, %arg1 : i32, i32
  }
}

module attributes {stable_mosaic.version = 11 : i64} {
  func.func @_scale_ensemble_kernel(%arg0: i32, %arg1: i32, %arg2: memref<2x256xf32, #tpu.memory_space<vmem>>, %arg3: memref<1x256xf32, #tpu.memory_space<vmem>>, %arg4: memref<2x256xf32, #tpu.memory_space<vmem>>) attributes {dimension_semantics = [#tpu.dimension_semantics<parallel>, #tpu.dimension_semantics<arbitrary>], iteration_bounds = array<i64: 1, 1>, scalar_prefetch = 0 : i64, scratch_operands = 0 : i64, tpu.core_type = #tpu.core_type<tc>, window_params = [{transform_indices = @transform_0, window_bounds = array<i64: 2, 256>}, {transform_indices = @transform_1, window_bounds = array<i64: 1, 256>}, {transform_indices = @transform_2, window_bounds = array<i64: 2, 256>}]} {
    %c0 = arith.constant 0 : index
    %c0_0 = arith.constant 0 : index
    %0 = vector.load %arg2[%c0, %c0_0] : memref<2x256xf32, #tpu.memory_space<vmem>>, vector<2x256xf32>
    %c0_1 = arith.constant 0 : index
    %c0_2 = arith.constant 0 : index
    %1 = vector.load %arg3[%c0_1, %c0_2] : memref<1x256xf32, #tpu.memory_space<vmem>>, vector<1x256xf32>
    %2 = vector.broadcast %1 : vector<1x256xf32> to vector<2x256xf32>
    %3 = arith.mulf %0, %2 : vector<2x256xf32>
    %c0_3 = arith.constant 0 : index
    %c0_4 = arith.constant 0 : index
    %4 = vector.load %arg4[%c0_3, %c0_4] : memref<2x256xf32, #tpu.memory_space<vmem>>, vector<2x256xf32>
    tpu.vector_store %arg4[%c0_3, %c0_4], %3 {strides = array<i32>} : memref<2x256xf32, #tpu.memory_space<vmem>>, vector<2x256xf32>,
    return
  }
  func.func @transform_0(%arg0: i32, %arg1: i32) -> (i32, i32) {
    %c0_i32 = arith.constant 0 : i32
    return %arg0, %arg1 : i32, i32
  }
  func.func @transform_1(%arg0: i32, %arg1: i32) -> (i32, i32) {
    %c0_i32 = arith.constant 0 : i32
    %c0_i32_0 = arith.constant 0 : i32
    return %c0_i32, %arg1 : i32, i32
  }
  func.func @transform_2(%arg0: i32, %arg1: i32) -> (i32, i32) {
    %c0_i32 = arith.constant 0 : i32
    return %arg0, %arg1 : i32, i32
  }
}

</mosaic_0001>

<llo_original>
// kernel: tpu_custom_call.1
$region0: #{tpu_custom_call.1}
  #allocation0 [shape = 'u32[]', space=smem, size = 0x4, offset = 0x4, fixed_abs, tag = 'smem constant byte address 0x4 - core index']
  #allocation1 [shape = 'u32[144,128]{1,0:T(1,128)}', space=vmem, size = 0x12000, scoped, tag = 'internal scratch']
  %s0 = inlined_call_operand.hbm [shape: f32[2,256], index: 0, kind: input, shape index: {}]
  %s1 = inlined_call_operand.hbm [shape: f32[1,256], index: 1, kind: input, shape index: {}]
  %s2 = inlined_call_operand.hbm [shape: f32[2,256], index: 2, kind: output, shape index: {}]
  %s3 = sld [smem:[#allocation0]]
  $region26: #{tpu_custom_call.1} parent=0
    _
  %s5 = ssub.s32 1, %s3
  %s6 = scalar_select 0, %s5, %s3
  $region1: #{tpu_custom_call.1} parent=0
    #allocation2 [shape = 'u8[2048]{0}', space=vmem, size = 0x800, scoped, tag = 'input window, operand 0, single buffered']
    #allocation3 [shape = 's32[1]{0}', space=sflag, size = 0x4, scoped, tag = 'scoped memory for tpu_custom_call.1']
    #allocation4 [shape = 's32[1]{0}', space=sflag, size = 0x4, scoped, tag = 'scoped memory for tpu_custom_call.1']
    #allocation5 [shape = 'u8[1024]{0}', space=vmem, size = 0x400, scoped, tag = 'input window, operand 1, single buffered']
    #allocation6 [shape = 's32[1]{0}', space=sflag, size = 0x4, scoped, tag = 'scoped memory for tpu_custom_call.1']
    #allocation7 [shape = 'u8[2048]{0}', space=vmem, size = 0x800, scoped, tag = 'output window, operand 0, single buffered']
    %7 = vsyncpa [#allocation3], 0
    %8 = vsyncpa [#allocation6], 0
    %9 = vsyncpa [#allocation4], 0
    // Predicated region
    $region2: #{tpu_custom_call.1} parent=1 // pred_check
      _
    $region3: #{tpu_custom_call.1} parent=1 // pred_check_branch
      %11 = sbr.rel (0) target = $region5
    $region4: #{tpu_custom_call.1} parent=1 // pred_region
      %s13 = ssub.s32 64, 64
      %14 = vsyncadd [#allocation3], %s13
      %s15 = smul.addr %s6, 2
      %s16 = smul.addr %s15, 32
      %s17 = scalar_lea.hbm %s0, %s16
      %s19 = sshll.u32 [#allocation2], 4
      %s20 = int_to_ptr.vmem [resolvable:$true] %s19
      %22 = dma.hbm_to_vmem [thread:$0]  %s17, 64, %s20, [#allocation3]
    $region5: #{tpu_custom_call.1} parent=1 // pred_fallthru
      _
    // Predicated region
    $region6: #{tpu_custom_call.1} parent=1 // pred_check
      _
    $region7: #{tpu_custom_call.1} parent=1 // pred_check_branch
      %24 = sbr.rel (0) target = $region9
    $region8: #{tpu_custom_call.1} parent=1 // pred_region
      %s26 = ssub.s32 32, 32
      %27 = vsyncadd [#allocation6], %s26
      %s29 = sshll.u32 [#allocation5], 4
      %s30 = int_to_ptr.vmem [resolvable:$true] %s29
      %32 = dma.hbm_to_vmem [thread:$0]  %s1, 32, %s30, [#allocation6]
    $region9: #{tpu_custom_call.1} parent=1 // pred_fallthru
      _
    // Predicated region
    $region10: #{tpu_custom_call.1} parent=1 // pred_check
      _
    $region11: #{tpu_custom_call.1} parent=1 // pred_check_branch
      %34 = sbr.rel (0) target = $region13
    $region12: #{tpu_custom_call.1} parent=1 // pred_region
      %35 = dma.done [#allocation3], 64
    $region13: #{tpu_custom_call.1} parent=1 // pred_fallthru
      _
    // Predicated region
    $region14: #{tpu_custom_call.1} parent=1 // pred_check
      _
    $region15: #{tpu_custom_call.1} parent=1 // pred_check_branch
      %37 = sbr.rel (0) target = $region17
    $region16: #{tpu_custom_call.1} parent=1 // pred_region
      %38 = dma.done [#allocation6], 32
    $region17: #{tpu_custom_call.1} parent=1 // pred_fallthru
      _
    %v39 = vld [vmem:[#allocation2] sm:$0xf]
    %v40 = vld [vmem:[#allocation5] sm:$0x3]
    %v42 = vlaneseq
    %v43 = vshrl.u32 %v42, 7
    %v44 = vsub.s32 0, %v43
    %v45 = vrot.slane %v40, %v44
    %v46 = vlaneseq
    %v47 = vshrl.u32 %v46, 7
    %v48 = vsub.s32 1, %v47
    %v49 = vrot.slane %v40, %v48
    %v50 = vcombine.low %v45, %v49
    %v52 = vunpack.c.l.s4 1983009808
    %v53 = vunpack.c.0.s8 %v52
    %v54 = vlaneseq
    %v55 = vshrl.u32 %v54, 7
    %v56 = vsub.s32 %v53, %v55
    %v57 = vrot.slane %v50, %v56
    %v59 = vmul.f32 %v39, %v57
    %60 = vst [vmem:[#allocation7] sm:$0xf] %v59
    // Predicated region
    $region18: #{tpu_custom_call.1} parent=1 // pred_check
      _
    $region19: #{tpu_custom_call.1} parent=1 // pred_check_branch
      %62 = sbr.rel (0) target = $region21
    $region20: #{tpu_custom_call.1} parent=1 // pred_region
      %s64 = ssub.s32 64, 64
      %65 = vsyncadd [#allocation4], %s64
      %s66 = smul.addr %s6, 2
      %s67 = smul.addr %s66, 32
      %s68 = scalar_lea.hbm %s2, %s67
      %s70 = sshll.u32 [#allocation7], 4
      %s71 = int_to_ptr.vmem [resolvable:$true] %s70
      %73 = dma.vmem_to_hbm [thread:$0]  %s71, 64, %s68, [#allocation4]
    $region21: #{tpu_custom_call.1} parent=1 // pred_fallthru
      _
    // Predicated region
    $region22: #{tpu_custom_call.1} parent=1 // pred_check
      _
    $region23: #{tpu_custom_call.1} parent=1 // pred_check_branch
      %75 = sbr.rel (0) target = $region25
    $region24: #{tpu_custom_call.1} parent=1 // pred_region
      %76 = dma.done [#allocation4], 64
    $region25: #{tpu_custom_call.1} parent=1 // pred_fallthru
      _
    %77 = vsyncpa [#allocation3], 1
    %78 = vsyncpa [#allocation6], 1
    %79 = vsyncpa [#allocation4], 1

// kernel: tpu_custom_call.1
$region0: #{tpu_custom_call.1}
  #allocation0 [shape = 'u32[]', space=smem, size = 0x4, offset = 0x4, fixed_abs, tag = 'smem constant byte address 0x4 - core index']
  #allocation1 [shape = 'u32[144,128]{1,0:T(1,128)}', space=vmem, size = 0x12000, scoped, tag = 'internal scratch']
  %s0 = inlined_call_operand.hbm [shape: f32[2,256], index: 0, kind: input, shape index: {}]
  %s1 = inlined_call_operand.hbm [shape: f32[1,256], index: 1, kind: input, shape index: {}]
  %s2 = inlined_call_operand.hbm [shape: f32[2,256], index: 2, kind: output, shape index: {}]
  %s3 = sld [smem:[#allocation0]]
  $region26: #{tpu_custom_call.1} parent=0
    _
  %s5 = ssub.s32 1, %s3
  %s6 = scalar_select 0, %s5, %s3
  $region1: #{tpu_custom_call.1} parent=0
    #allocation2 [shape = 'u8[2048]{0}', space=vmem, size = 0x800, scoped, tag = 'input window, operand 0, single buffered']
    #allocation3 [shape = 's32[1]{0}', space=sflag, size = 0x4, scoped, tag = 'scoped memory for tpu_custom_call.1']
    #allocation4 [shape = 's32[1]{0}', space=sflag, size = 0x4, scoped, tag = 'scoped memory for tpu_custom_call.1']
    #allocation5 [shape = 'u8[1024]{0}', space=vmem, size = 0x400, scoped, tag = 'input window, operand 1, single buffered']
    #allocation6 [shape = 's32[1]{0}', space=sflag, size = 0x4, scoped, tag = 'scoped memory for tpu_custom_call.1']
    #allocation7 [shape = 'u8[2048]{0}', space=vmem, size = 0x800, scoped, tag = 'output window, operand 0, single buffered']
    %7 = vsyncpa [#allocation3], 0
    %8 = vsyncpa [#allocation6], 0
    %9 = vsyncpa [#allocation4], 0
    // Predicated region
    $region2: #{tpu_custom_call.1} parent=1 // pred_check
      _
    $region3: #{tpu_custom_call.1} parent=1 // pred_check_branch
      %11 = sbr.rel (0) target = $region5
    $region4: #{tpu_custom_call.1} parent=1 // pred_region
      %s13 = ssub.s32 64, 64
      %14 = vsyncadd [#allocation3], %s13
      %s16 = sshll.u32 [#allocation2], 4
      %s17 = int_to_ptr.vmem [resolvable:$true] %s16
      %19 = dma.hbm_to_vmem [thread:$0]  %s0, 64, %s17, [#allocation3]
    $region5: #{tpu_custom_call.1} parent=1 // pred_fallthru
      _
    // Predicated region
    $region6: #{tpu_custom_call.1} parent=1 // pred_check
      _
    $region7: #{tpu_custom_call.1} parent=1 // pred_check_branch
      %21 = sbr.rel (0) target = $region9
    $region8: #{tpu_custom_call.1} parent=1 // pred_region
      %s23 = ssub.s32 32, 32
      %24 = vsyncadd [#allocation6], %s23
      %s26 = sshll.u32 [#allocation5], 4
      %s27 = int_to_ptr.vmem [resolvable:$true] %s26
      %29 = dma.hbm_to_vmem [thread:$0]  %s1, 32, %s27, [#allocation6]
    $region9: #{tpu_custom_call.1} parent=1 // pred_fallthru
      _
    // Predicated region
    $region10: #{tpu_custom_call.1} parent=1 // pred_check
      _
    $region11: #{tpu_custom_call.1} parent=1 // pred_check_branch
      %31 = sbr.rel (0) target = $region13
    $region12: #{tpu_custom_call.1} parent=1 // pred_region
      %32 = dma.done [#allocation3], 64
    $region13: #{tpu_custom_call.1} parent=1 // pred_fallthru
      _
    // Predicated region
    $region14: #{tpu_custom_call.1} parent=1 // pred_check
      _
    $region15: #{tpu_custom_call.1} parent=1 // pred_check_branch
      %34 = sbr.rel (0) target = $region17
    $region16: #{tpu_custom_call.1} parent=1 // pred_region
      %35 = dma.done [#allocation6], 32
    $region17: #{tpu_custom_call.1} parent=1 // pred_fallthru
      _
    %v36 = vld [vmem:[#allocation2] sm:$0xf]
    %v37 = vld [vmem:[#allocation5] sm:$0x3]
    %v39 = vlaneseq
    %v40 = vshrl.u32 %v39, 7
    %v41 = vsub.s32 0, %v40
    %v42 = vrot.slane %v37, %v41
    %v43 = vlaneseq
    %v44 = vshrl.u32 %v43, 7
    %v45 = vsub.s32 1, %v44
    %v46 = vrot.slane %v37, %v45
    %v47 = vcombine.low %v42, %v46
    %v49 = vunpack.c.l.s4 1983009808
    %v50 = vunpack.c.0.s8 %v49
    %v51 = vlaneseq
    %v52 = vshrl.u32 %v51, 7
    %v53 = vsub.s32 %v50, %v52
    %v54 = vrot.slane %v47, %v53
    %v56 = vmul.f32 %v36, %v54
    %57 = vst [vmem:[#allocation7] sm:$0xf] %v56
    // Predicated region
    $region18: #{tpu_custom_call.1} parent=1 // pred_check
      _
    $region19: #{tpu_custom_call.1} parent=1 // pred_check_branch
      %59 = sbr.rel (0) target = $region21
    $region20: #{tpu_custom_call.1} parent=1 // pred_region
      %s61 = ssub.s32 64, 64
      %62 = vsyncadd [#allocation4], %s61
      %s64 = sshll.u32 [#allocation7], 4
      %s65 = int_to_ptr.vmem [resolvable:$true] %s64
      %67 = dma.vmem_to_hbm [thread:$0]  %s65, 64, %s2, [#allocation4]
    $region21: #{tpu_custom_call.1} parent=1 // pred_fallthru
      _
    // Predicated region
    $region22: #{tpu_custom_call.1} parent=1 // pred_check
      _
    $region23: #{tpu_custom_call.1} parent=1 // pred_check_branch
      %69 = sbr.rel (0) target = $region25
    $region24: #{tpu_custom_call.1} parent=1 // pred_region
      %70 = dma.done [#allocation4], 64
    $region25: #{tpu_custom_call.1} parent=1 // pred_fallthru
      _
    %71 = vsyncpa [#allocation3], 1
    %72 = vsyncpa [#allocation6], 1
    %73 = vsyncpa [#allocation4], 1

</llo_original>
